<compile_context>
chip_gen: v6e
topology: v6e:2x2x1
jax: 0.10.0
libtpu: 0.0.40
codegen_flags: <defaults>
</compile_context>

<pallas_src>
import jax
import jax.numpy as jnp
from jax import lax
from jax.experimental import pallas as pl
from jax.experimental.pallas import tpu as pltpu


def _wce_kernel(x_ref, cls_ref, w_ref, o_ref):
    # Blocks: x -> (C, T) classes on sublanes / anchors on lanes;
    #         cls, w, o -> (1, T) anchors on lanes.
    x = x_ref[...].astype(jnp.float32)           # (C, T)
    cls = cls_ref[...]                           # (1, T) int32
    w = w_ref[...].astype(jnp.float32)           # (1, T)

    # Numerically stable log-sum-exp over the class (sublane) axis.
    m = jnp.max(x, axis=0, keepdims=True)                                # (1, T)
    lse = jnp.log(jnp.sum(jnp.exp(x - m), axis=0, keepdims=True)) + m    # (1, T)

    # Target logit: single compare of the class iota against the class index.
    cls_iota = lax.broadcasted_iota(jnp.int32, x.shape, dimension=0)     # (C, T)
    tgt = jnp.sum(jnp.where(cls_iota == cls, x, 0.0), axis=0, keepdims=True)

    o_ref[...] = ((lse - tgt) * w).astype(o_ref.dtype)                   # (1, T)


def _pick_anchor_tile(n_classes, in_itemsize, budget_bytes):
    """Largest anchor tile whose double-buffered logits block plus in-kernel
    f32/i32 temporaries fit the VMEM budget (>=128, <=32768, mult. of 128)."""
    per_anchor = n_classes * (2 * in_itemsize + 12) + 48
    tile = int(budget_bytes // per_anchor)
    tile = max(128, min(tile, 32768))
    return tile - tile % 128


def weighted_cross_entropy_loss(logits, target, weights, *, anchor_tile=None,
                                vmem_budget_bytes=8 << 20):
    """logits, target: (B, A, C); weights: (B, A).  Returns (B, A) f32 loss."""
    B, A, C = logits.shape
    assert target.shape == (B, A, C)
    assert weights.shape == (B, A)
    N = B * A
    in_itemsize = jnp.dtype(logits.dtype).itemsize
    w_itemsize = jnp.dtype(weights.dtype).itemsize

    if anchor_tile is not None:
        tile = max(128, (int(anchor_tile) // 128) * 128)
    else:
        tile = _pick_anchor_tile(C, in_itemsize, vmem_budget_bytes)
    if N <= tile:
        tile = N                       # single full-extent block, no padding

    n_tiles = pl.cdiv(N, tile)
    n_pad = n_tiles * tile

    # Drop the dense one-hot stream: class indices only (argmax = first max,
    # identical to torch for one-hot / tied soft labels).
    cls = jnp.argmax(target, axis=-1).astype(jnp.int32).reshape(1, N)
    w2 = weights.reshape(1, N)
    x2 = logits.reshape(N, C)          # free, contiguous

    if n_pad != N:
        pad = n_pad - N
        # zero-padded anchors give finite log(C) loss * w=0, sliced away below.
        x2 = jnp.pad(x2, ((0, pad), (0, 0)))
        cls = jnp.pad(cls, ((0, 0), (0, pad)))
        w2 = jnp.pad(w2, ((0, 0), (0, pad)))

    # Classes on sublanes, anchors on lanes (this is the layout the producer
    # of input.permute(0, 2, 1) would emit natively).
    xt = x2.T                          # (C, n_pad)

    # Explicit scoped-VMEM limit: double-buffered logits block + f32 temps.
    vmem_est = (2 * C * tile * in_itemsize      # logits double buffer
                + 4 * C * tile * 4              # in-kernel temporaries
                + 6 * tile * 4                  # cls / weights / out buffers
                + (2 << 20))                    # slack
    vmem_limit = int(min(max(vmem_est, 32 << 20), 48 << 20))

    out = pl.pallas_call(
        _wce_kernel,
        out_shape=jax.ShapeDtypeStruct((1, n_pad), jnp.float32),
        grid_spec=pltpu.PrefetchScalarGridSpec(
            num_scalar_prefetch=0,
            grid=(n_tiles,),
            in_specs=[
                pl.BlockSpec((C, tile), lambda i: (0, i)),   # logits (C, N)
                pl.BlockSpec((1, tile), lambda i: (0, i)),   # class indices
                pl.BlockSpec((1, tile), lambda i: (0, i)),   # anchor weights
            ],
            out_specs=pl.BlockSpec((1, tile), lambda i: (0, i)),
        ),
        compiler_params=pltpu.CompilerParams(
            dimension_semantics=("parallel",),
            vmem_limit_bytes=vmem_limit),
        cost_estimate=pl.CostEstimate(
            flops=6 * N * C,
            transcendentals=N * C + N,
            bytes_accessed=N * C * in_itemsize + N * 4 + N * w_itemsize + N * 4),
    )(xt, cls, w2)

    if n_pad != N:
        out = out[:, :N]
    return out.reshape(B, A)


def _reference(logits, target, weights):
    x = logits.astype(jnp.float32)
    m = jnp.max(x, axis=-1)
    lse = jnp.log(jnp.sum(jnp.exp(x - m[..., None]), axis=-1)) + m
    idx = jnp.argmax(target, axis=-1)
    tgt = jnp.take_along_axis(x, idx[..., None], axis=-1)[..., 0]
    return (lse - tgt) * weights.astype(jnp.float32)


if __name__ == "__main__":
    key = jax.random.PRNGKey(0)
    k1, k2, k3, k4, k5, k6 = jax.random.split(key, 6)

    # Case 1: small detection-style shapes (single full block).
    B, A, C = 2, 128, 8
    logits = jax.random.normal(k1, (B, A, C), dtype=jnp.float32)
    cls = jax.random.randint(k2, (B, A), 0, C)
    target = jax.nn.one_hot(cls, C, dtype=jnp.float32)
    weights = jax.random.uniform(k3, (B, A), dtype=jnp.float32)

    out = jax.block_until_ready(weighted_cross_entropy_loss(logits, target, weights))
    ref = _reference(logits, target, weights)
    assert out.shape == (B, A) and out.dtype == jnp.float32
    assert jnp.allclose(out, ref, atol=1e-4, rtol=1e-5), (
        float(jnp.max(jnp.abs(out - ref))))

    # Case 2: non-divisible anchor count + forced multi-step grid
    # (exercises the tiling / padding path).
    B2, A2, C2 = 2, 1000, 8
    logits2 = jax.random.normal(k4, (B2, A2, C2), dtype=jnp.float32)
    cls2 = jax.random.randint(k5, (B2, A2), 0, C2)
    target2 = jax.nn.one_hot(cls2, C2, dtype=jnp.float32)
    weights2 = jax.random.uniform(k6, (B2, A2), dtype=jnp.float32)

    out2 = jax.block_until_ready(
        weighted_cross_entropy_loss(logits2, target2, weights2, anchor_tile=256))
    ref2 = _reference(logits2, target2, weights2)
    assert out2.shape == (B2, A2)
    assert jnp.allclose(out2, ref2, atol=1e-4, rtol=1e-5), (
        float(jnp.max(jnp.abs(out2 - ref2))))

    print("KERNEL_OK")
</pallas_src>

<mosaic_0001>
module attributes {stable_mosaic.version = 11 : i64} {
  func.func @_wce_kernel(%arg0: i32, %arg1: memref<8x256xf32, #tpu.memory_space<vmem>>, %arg2: memref<1x256xi32, #tpu.memory_space<vmem>>, %arg3: memref<1x256xf32, #tpu.memory_space<vmem>>, %arg4: memref<1x256xf32, #tpu.memory_space<vmem>>) attributes {dimension_semantics = [#tpu.dimension_semantics<parallel>], iteration_bounds = array<i64: 1>, scalar_prefetch = 0 : i64, scratch_operands = 0 : i64, tpu.core_type = #tpu.core_type<tc>, window_params = [{transform_indices = @transform_0, window_bounds = array<i64: 8, 256>}, {transform_indices = @transform_1, window_bounds = array<i64: 1, 256>}, {transform_indices = @transform_2, window_bounds = array<i64: 1, 256>}, {transform_indices = @transform_3, window_bounds = array<i64: 1, 256>}]} {
    %c0 = arith.constant 0 : index
    %c0_0 = arith.constant 0 : index
    %0 = vector.load %arg1[%c0, %c0_0] : memref<8x256xf32, #tpu.memory_space<vmem>>, vector<8x256xf32>
    %c0_1 = arith.constant 0 : index
    %c0_2 = arith.constant 0 : index
    %1 = vector.load %arg2[%c0_1, %c0_2] : memref<1x256xi32, #tpu.memory_space<vmem>>, vector<1x256xi32>
    %c0_3 = arith.constant 0 : index
    %c0_4 = arith.constant 0 : index
    %2 = vector.load %arg3[%c0_3, %c0_4] : memref<1x256xf32, #tpu.memory_space<vmem>>, vector<1x256xf32>
    %cst = arith.constant dense<0xFF800000> : vector<256xf32>
    %3 = vector.multi_reduction <maximumf>, %0, %cst [0] : vector<8x256xf32> to vector<256xf32>
    %4 = vector.shape_cast %3 : vector<256xf32> to vector<1x256xf32>
    %5 = vector.broadcast %4 : vector<1x256xf32> to vector<8x256xf32>
    %6 = arith.subf %0, %5 : vector<8x256xf32>
    %7 = math.exp %6 : vector<8x256xf32>
    %cst_5 = arith.constant dense<0.000000e+00> : vector<256xf32>
    %8 = vector.multi_reduction <add>, %7, %cst_5 [0] : vector<8x256xf32> to vector<256xf32>
    %9 = vector.shape_cast %8 : vector<256xf32> to vector<1x256xf32>
    %10 = math.log %9 : vector<1x256xf32>
    %11 = arith.addf %10, %4 : vector<1x256xf32>
    %12 = tpu.iota {dimensions = array<i32: 0>} : vector<8x256xi32>
    %13 = vector.broadcast %1 : vector<1x256xi32> to vector<8x256xi32>
    %14 = arith.cmpi eq, %12, %13 : vector<8x256xi32>
    %cst_6 = arith.constant 0.000000e+00 : f32
    %15 = vector.broadcast %cst_6 : f32 to vector<8x256xf32>
    %16 = arith.select %14, %0, %15 : vector<8x256xi1>, vector<8x256xf32>
    %cst_7 = arith.constant dense<0.000000e+00> : vector<256xf32>
    %17 = vector.multi_reduction <add>, %16, %cst_7 [0] : vector<8x256xf32> to vector<256xf32>
    %18 = vector.shape_cast %17 : vector<256xf32> to vector<1x256xf32>
    %19 = arith.subf %11, %18 : vector<1x256xf32>
    %20 = arith.mulf %19, %2 : vector<1x256xf32>
    %c0_8 = arith.constant 0 : index
    %c0_9 = arith.constant 0 : index
    %21 = vector.load %arg4[%c0_8, %c0_9] : memref<1x256xf32, #tpu.memory_space<vmem>>, vector<1x256xf32>
    tpu.vector_store %arg4[%c0_8, %c0_9], %20 {strides = array<i32>} : memref<1x256xf32, #tpu.memory_space<vmem>>, vector<1x256xf32>,
    return
  }
  func.func @transform_0(%arg0: i32) -> (i32, i32) {
    %c0_i32 = arith.constant 0 : i32
    %c0_i32_0 = arith.constant 0 : i32
    return %c0_i32, %arg0 : i32, i32
  }
  func.func @transform_1(%arg0: i32) -> (i32, i32) {
    %c0_i32 = arith.constant 0 : i32
    %c0_i32_0 = arith.constant 0 : i32
    return %c0_i32, %arg0 : i32, i32
  }
  func.func @transform_2(%arg0: i32) -> (i32, i32) {
    %c0_i32 = arith.constant 0 : i32
    %c0_i32_0 = arith.constant 0 : i32
    return %c0_i32, %arg0 : i32, i32
  }
  func.func @transform_3(%arg0: i32) -> (i32, i32) {
    %c0_i32 = arith.constant 0 : i32
    %c0_i32_0 = arith.constant 0 : i32
    return %c0_i32, %arg0 : i32, i32
  }
}

</mosaic_0001>

<llo_original>
// kernel: tpu_custom_call.1
$region0: #{tpu_custom_call.1}
  #allocation0 [shape = 'u32[]', space=smem, size = 0x4, offset = 0x4, fixed_abs, tag = 'smem constant byte address 0x4 - core index']
  #allocation1 [shape = 'u32[144,128]{1,0:T(1,128)}', space=vmem, size = 0x12000, scoped, tag = 'internal scratch']
  %s0 = inlined_call_operand.hbm [shape: f32[8,256], index: 0, kind: input, shape index: {}]
  %s1 = inlined_call_operand.hbm [shape: s32[1,256], index: 1, kind: input, shape index: {}]
  %s2 = inlined_call_operand.vmem [shape: f32[1,256], index: 2, kind: input, shape index: {}]
  %s3 = inlined_call_operand.hbm [shape: f32[1,256], index: 3, kind: output, shape index: {}]
  %s4 = sld [smem:[#allocation0]]
  $region30: #{tpu_custom_call.1} parent=0
    _
  %s6 = ssub.s32 1, %s4
  %s7 = scalar_select 0, %s6, %s4
  $region1: #{tpu_custom_call.1} parent=0
    #allocation2 [shape = 'u8[8192]{0}', space=vmem, size = 0x2000, scoped, tag = 'input window, operand 0, single buffered']
    #allocation3 [shape = 's32[1]{0}', space=sflag, size = 0x4, scoped, tag = 'scoped memory for tpu_custom_call.1']
    #allocation4 [shape = 's32[1]{0}', space=sflag, size = 0x4, scoped, tag = 'scoped memory for tpu_custom_call.1']
    #allocation5 [shape = 'u8[1024]{0}', space=vmem, size = 0x400, scoped, tag = 'input window, operand 1, single buffered']
    #allocation6 [shape = 's32[1]{0}', space=sflag, size = 0x4, scoped, tag = 'scoped memory for tpu_custom_call.1']
    #allocation7 [shape = 'u8[1024]{0}', space=vmem, size = 0x400, scoped, tag = 'output window, operand 0, single buffered']
    %8 = vsyncpa [#allocation3], 0
    %9 = vsyncpa [#allocation6], 0
    %10 = vsyncpa [#allocation4], 0
    // Predicated region
    $region2: #{tpu_custom_call.1} parent=1 // pred_check
      _
    $region3: #{tpu_custom_call.1} parent=1 // pred_check_branch
      %12 = sbr.rel (0) target = $region5
    $region4: #{tpu_custom_call.1} parent=1 // pred_region
      %s14 = ssub.s32 256, 256
      %15 = vsyncadd [#allocation3], %s14
      %s17 = sshll.u32 [#allocation2], 4
      %s18 = int_to_ptr.vmem [resolvable:$true] %s17
      %20 = dma.hbm_to_vmem [thread:$0]  %s0, 256, %s18, [#allocation3]
    $region5: #{tpu_custom_call.1} parent=1 // pred_fallthru
      _
    // Predicated region
    $region6: #{tpu_custom_call.1} parent=1 // pred_check
      _
    $region7: #{tpu_custom_call.1} parent=1 // pred_check_branch
      %22 = sbr.rel (0) target = $region9
    $region8: #{tpu_custom_call.1} parent=1 // pred_region
      %s24 = ssub.s32 32, 32
      %25 = vsyncadd [#allocation6], %s24
      %s27 = sshll.u32 [#allocation5], 4
      %s28 = int_to_ptr.vmem [resolvable:$true] %s27
      %30 = dma.hbm_to_vmem [thread:$0]  %s1, 32, %s28, [#allocation6]
    $region9: #{tpu_custom_call.1} parent=1 // pred_fallthru
      _
    // Predicated region
    $region10: #{tpu_custom_call.1} parent=1 // pred_check
      _
    $region11: #{tpu_custom_call.1} parent=1 // pred_check_branch
      %32 = sbr.rel (0) target = $region13
    $region12: #{tpu_custom_call.1} parent=1 // pred_region
      _
    $region13: #{tpu_custom_call.1} parent=1 // pred_fallthru
      _
    // Predicated region
    $region14: #{tpu_custom_call.1} parent=1 // pred_check
      _
    $region15: #{tpu_custom_call.1} parent=1 // pred_check_branch
      %34 = sbr.rel (0) target = $region17
    $region16: #{tpu_custom_call.1} parent=1 // pred_region
      %35 = dma.done [#allocation3], 256
    $region17: #{tpu_custom_call.1} parent=1 // pred_fallthru
      _
    // Predicated region
    $region18: #{tpu_custom_call.1} parent=1 // pred_check
      _
    $region19: #{tpu_custom_call.1} parent=1 // pred_check_branch
      %37 = sbr.rel (0) target = $region21
    $region20: #{tpu_custom_call.1} parent=1 // pred_region
      %38 = dma.done [#allocation6], 32
    $region21: #{tpu_custom_call.1} parent=1 // pred_fallthru
      _
    %v39 = vld [vmem:[#allocation2] sm:$0xff]
    %v40 = vld [vmem:[#allocation2 + $0x8] sm:$0xff]
    %v41 = vld [vmem:[#allocation5] sm:$0x3]
    %v42 = vld [vmem:[%s2] sm:$0x3]
    %v43 = vrot.slane %v39, 4
    %v44 = vmax.f32 %v39, %v43
    %v45 = vrot.slane %v44, 2
    %v46 = vmax.f32 %v44, %v45
    %v47 = vrot.slane %v46, 1
    %v48 = vmax.f32 %v46, %v47
    %v49 = vrot.slane %v40, 4
    %v50 = vmax.f32 %v40, %v49
    %v51 = vrot.slane %v50, 2
    %v52 = vmax.f32 %v50, %v51
    %v53 = vrot.slane %v52, 1
    %v54 = vmax.f32 %v52, %v53
    %v55 = vsub.f32 %v39, %v48
    %v56 = vsub.f32 %v40, %v54
    %v57 = vmul.f32 %v55, 1.442695
    %v58 = vpow.pop %v57
    %v59 = vmul.f32 %v56, 1.442695
    %v60 = vpow.pop %v59
    %v61 = vrot.slane %v58, 4
    %v62 = vadd.f32 %v58, %v61
    %v63 = vrot.slane %v62, 2
    %v64 = vadd.f32 %v62, %v63
    %v65 = vrot.slane %v64, 1
    %v66 = vadd.f32 %v64, %v65
    %v67 = vrot.slane %v60, 4
    %v68 = vadd.f32 %v60, %v67
    %v69 = vrot.slane %v68, 2
    %v70 = vadd.f32 %v68, %v69
    %v71 = vrot.slane %v70, 1
    %v72 = vadd.f32 %v70, %v71
    %v73 = vlog2.pop %v66
    %v74 = vmul.f32 %v73, 0.6931472
    %v75 = vlog2.pop %v72
    %v76 = vmul.f32 %v75, 0.6931472
    %v77 = vadd.f32 %v74, %v48
    %v78 = vadd.f32 %v76, %v54
    %v79 = vlaneseq
    %v80 = vshrl.u32 %v79, 7
    %v81 = vlaneseq
    %v82 = vshrl.u32 %v81, 7
    %v83 = vsub.s32 0, %v82
    %v84 = vrot.slane %v41, %v83
    %v85 = vlaneseq
    %v86 = vshrl.u32 %v85, 7
    %v87 = vsub.s32 1, %v86
    %v88 = vrot.slane %v41, %v87
    %vm89 = vcmp.eq.s32.totalorder %v80, %v84
    %vm90 = vcmp.eq.s32.totalorder %v80, %v88
    %v91 = vsel %vm89, %v39, 0.0
    %v92 = vsel %vm90, %v40, 0.0
    %v93 = vrot.slane %v91, 4
    %v94 = vadd.f32 %v91, %v93
    %v95 = vrot.slane %v94, 2
    %v96 = vadd.f32 %v94, %v95
    %v97 = vrot.slane %v96, 1
    %v98 = vadd.f32 %v96, %v97
    %v99 = vrot.slane %v92, 4
    %v100 = vadd.f32 %v92, %v99
    %v101 = vrot.slane %v100, 2
    %v102 = vadd.f32 %v100, %v101
    %v103 = vrot.slane %v102, 1
    %v104 = vadd.f32 %v102, %v103
    %v105 = vsub.f32 %v77, %v98
    %v106 = vsub.f32 %v78, %v104
    %v108 = vlaneseq
    %v109 = vshrl.u32 %v108, 7
    %v110 = vsub.s32 0, %v109
    %v111 = vrot.slane %v42, %v110
    %v112 = vlaneseq
    %v113 = vshrl.u32 %v112, 7
    %v114 = vsub.s32 1, %v113
    %v115 = vrot.slane %v42, %v114
    %v118 = vmul.f32 %v105, %v111
    %v119 = vmul.f32 %v106, %v115
    %v122 = vcombine.low %v118, %v119
    %v124 = vunpack.c.l.s4 1966171168
    %v125 = vunpack.c.0.s8 %v124
    %v126 = vlaneseq
    %v127 = vshrl.u32 %v126, 7
    %v128 = vsub.s32 %v125, %v127
    %v129 = vrot.slane %v122, %v128
    %v131 = vunpack.c.l.s4 1966171168
    %v132 = vunpack.c.0.s8 %v131
    %v133 = vlaneseq
    %v134 = vshrl.u32 %v133, 7
    %v135 = vsub.s32 %v132, %v134
    %v136 = vrot.slane %v129, %v135
    %v138 = vlaneseq
    %vm139 = vcmp.ge.s32.totalorder %v138, 0
    %vm140 = vcmp.lt.s32.totalorder %v138, 256
    %vm141 = vmand %vm139, %vm140
    %142 = vst.msk [vmem:[#allocation7] sm:$0x3] %vm141, %v136
    // Predicated region
    $region22: #{tpu_custom_call.1} parent=1 // pred_check
      _
    $region23: #{tpu_custom_call.1} parent=1 // pred_check_branch
      %144 = sbr.rel (0) target = $region25
    $region24: #{tpu_custom_call.1} parent=1 // pred_region
      %s146 = ssub.s32 32, 32
      %147 = vsyncadd [#allocation4], %s146
      %s149 = sshll.u32 [#allocation7], 4
      %s150 = int_to_ptr.vmem [resolvable:$true] %s149
      %152 = dma.vmem_to_hbm [thread:$0]  %s150, 32, %s3, [#allocation4]
    $region25: #{tpu_custom_call.1} parent=1 // pred_fallthru
      _
    // Predicated region
    $region26: #{tpu_custom_call.1} parent=1 // pred_check
      _
    $region27: #{tpu_custom_call.1} parent=1 // pred_check_branch
      %154 = sbr.rel (0) target = $region29
    $region28: #{tpu_custom_call.1} parent=1 // pred_region
      %155 = dma.done [#allocation4], 32
    $region29: #{tpu_custom_call.1} parent=1 // pred_fallthru
      _
    %156 = vsyncpa [#allocation3], 1
    %157 = vsyncpa [#allocation6], 1
    %158 = vsyncpa [#allocation4], 1

</llo_original>
